<compile_context>
chip_gen: v7x
topology: tpu7x:2x2x1
jax: 0.10.0
libtpu: 0.0.40
codegen_flags: <defaults>
</compile_context>

<pallas_src>
import functools

import jax
import jax.numpy as jnp
from jax.experimental import pallas as pl
from jax.experimental.pallas import tpu as pltpu


def _pnorm_kernel(pred_ref, out_ref, *, p, total_b, tile_b, needs_mask):
    i = pl.program_id(0)

    x = pred_ref[...].astype(jnp.float32)              # (TB, C)
    tb, _ = x.shape

    # Numerically stable softmax pieces (class axis == lane axis).
    m = jnp.max(x, axis=1, keepdims=True)               # (TB, 1)
    xm = x - m
    e = jnp.exp(xm)                                      # (TB, C)  one EUP pass
    denom = jnp.sum(e, axis=1, keepdims=True)            # (TB, 1)  lane reduce

    # prob**p = num * denom**(-p), where num = e**p. For "nice" p, num is built
    # from e without a second full-tile exp (cheap VPU mults / sqrt only).
    if p == 1.0:
        num = e
    elif p == 0.5:
        num = jnp.sqrt(e)
    elif p == 2.0:
        num = e * e
    elif p == 1.5:
        num = e * jnp.sqrt(e)
    elif p == 0.25:
        num = jnp.sqrt(jnp.sqrt(e))
    else:
        num = jnp.exp(jnp.float32(p) * xm)               # true-general fallback
    val = num * (denom ** jnp.float32(-p))               # pow only on (TB, 1)

    # clamp(prob, 1e-7, 1.0): lower bound pushed through the power.
    # prob < 1e-7  <=>  e < 1e-7 * denom  (differs from torch.clamp only at
    # exact equality — intentional, do not "fix"). Upper bound 1.0 is vacuous
    # for softmax outputs. MUST remain a select (NaN-safe for padded rows).
    low = jnp.float32(float(1e-7) ** p)
    val = jnp.where(e < jnp.float32(1e-7) * denom, low, val)

    norm = jnp.sum(val, axis=1, keepdims=True)           # (TB, 1)

    if needs_mask:
        # Zero padded rows of the final partial batch tile. Masking the (TB,1)
        # partials with a (TB,1) iota is ~C x cheaper than masking (TB,C), and
        # the select drops any NaN coming from uninitialized padding rows.
        row = jax.lax.broadcasted_iota(jnp.int32, (tb, 1), 0) + i * tile_b
        norm = jnp.where(row < total_b, norm, jnp.float32(0.0))

    # Per-block partial sum -> independent (1,1,1) output tile. Lets the
    # "parallel" grid axis shard across both v7x TensorCores and bounds
    # accumulation roundoff (final pairwise sum happens in the wrapper).
    out_ref[...] = jnp.sum(norm, axis=0, keepdims=True).reshape(1, 1, 1)


def _vmem_limit_bytes():
    """Generation-aware scoped-VMEM budget (64 MiB on v7x, 128 MiB v5e/v6e)."""
    try:
        cap = int(pltpu.get_tpu_info().vmem_capacity_bytes)
    except Exception:  # conservative fallback: v7x per-TensorCore VMEM
        cap = 64 * 1024 * 1024
    return int(min(0.75 * cap, 100 * 1024 * 1024))


def _choose_tile_rows(B, C, itemsize, row_align, vmem_limit):
    # Target ~2 MiB HBM blocks (amortizes ~0.35 us/grid-step overhead).
    target_block_bytes = 2 * 1024 * 1024
    tb = (target_block_bytes // max(1, C * itemsize)) // row_align * row_align
    tb = max(row_align, tb)
    # Cap so double-buffered input + ~4 f32 temporaries (x, e, num, val) of the
    # block stay well inside the scoped VMEM limit.
    per_row_bytes = C * (2 * itemsize + 4 * 4)
    cap = (int(vmem_limit * 0.6) // max(1, per_row_bytes)) // row_align * row_align
    tb = min(tb, max(row_align, cap))
    if B <= tb:
        return B        # single full-array block is always a legal block shape
    return tb


def pnorm(pred, p=0.5, *, block_rows=None):
    """Pallas TPU implementation of pNorm.forward. Returns a scalar f32.

    Fast path: pass bf16 logits (cast to f32 in-kernel) — halves HBM traffic
    for this memory-bound kernel. `p` must be a static Python scalar.
    """
    if not isinstance(p, (int, float)):
        raise TypeError("p must be a static Python scalar (got a traced value)")
    p = float(p)

    B, C = pred.shape
    itemsize = jnp.dtype(pred.dtype).itemsize
    row_align = 16 if itemsize < 4 else 8      # bf16 packs 2 rows per sublane
    vmem_limit = _vmem_limit_bytes()

    if block_rows is not None:
        tb = max(row_align, (int(block_rows) // row_align) * row_align)
        if B <= tb:
            tb = B
    else:
        tb = _choose_tile_rows(B, C, itemsize, row_align, vmem_limit)

    num_blocks = pl.cdiv(B, tb)
    needs_mask = (B % tb) != 0

    kernel = functools.partial(
        _pnorm_kernel, p=p, total_b=B, tile_b=tb, needs_mask=needs_mask
    )
    partials = pl.pallas_call(
        kernel,
        out_shape=jax.ShapeDtypeStruct((num_blocks, 1, 1), jnp.float32),
        grid_spec=pltpu.PrefetchScalarGridSpec(
            num_scalar_prefetch=0,
            grid=(num_blocks,),
            in_specs=[pl.BlockSpec((tb, C), lambda i: (i, 0))],
            # Each grid step owns its own output tile -> fully parallel grid.
            out_specs=pl.BlockSpec((1, 1, 1), lambda i: (i, 0, 0)),
        ),
        compiler_params=pltpu.CompilerParams(
            dimension_semantics=("parallel",),   # shards across v7x TensorCores
            vmem_limit_bytes=vmem_limit,
        ),
    )(pred)

    # Mean over the global batch (tiny reduce over per-block partial sums).
    return jnp.sum(partials, dtype=jnp.float32) / jnp.float32(B)


def _pnorm_ref(pred, p=0.5):
    """Pure-JAX reference mirroring the PyTorch module."""
    prob = jax.nn.softmax(pred.astype(jnp.float32), axis=1)
    prob = jnp.clip(prob, 1e-7, 1.0)
    return jnp.mean(jnp.sum(prob ** p, axis=1))


if __name__ == "__main__":
    key = jax.random.PRNGKey(0)
    k1, k2, k3, k4 = jax.random.split(key, 4)

    # Case 1: module-default p = 0.5, single tile (B=8, C=32 logits), f32.
    pred = jax.random.normal(k1, (8, 32), dtype=jnp.float32)
    out = jax.block_until_ready(pnorm(pred, p=0.5))
    ref = _pnorm_ref(pred, p=0.5)
    assert jnp.allclose(out, ref, rtol=1e-5, atol=1e-5), (out, ref)

    # Case 2: general p (fallback exp path), multiple tiles + partial last
    # tile exercising the (TB,1) row mask (B=20, block_rows=8 -> grid of 3).
    pred2 = jax.random.normal(k2, (20, 32), dtype=jnp.float32)
    out2 = jax.block_until_ready(pnorm(pred2, p=0.7, block_rows=8))
    ref2 = _pnorm_ref(pred2, p=0.7)
    assert jnp.allclose(out2, ref2, rtol=1e-5, atol=1e-5), (out2, ref2)

    # Case 3: bf16 logits (fast path), "nice" p=2 -> e*e, no second exp.
    pred3 = jax.random.normal(k3, (8, 32), dtype=jnp.bfloat16)
    out3 = jax.block_until_ready(pnorm(pred3, p=2.0))
    ref3 = _pnorm_ref(pred3, p=2.0)
    assert jnp.allclose(out3, ref3, rtol=1e-5, atol=1e-5), (out3, ref3)

    # Case 4: bf16, 16-row aligned tiles with a partial last block, p=1.5.
    pred4 = jax.random.normal(k4, (24, 32), dtype=jnp.bfloat16)
    out4 = jax.block_until_ready(pnorm(pred4, p=1.5, block_rows=16))
    ref4 = _pnorm_ref(pred4, p=1.5)
    assert jnp.allclose(out4, ref4, rtol=1e-5, atol=1e-5), (out4, ref4)

    print("KERNEL_OK")
</pallas_src>

<mosaic_0001>
module attributes {stable_mosaic.version = 11 : i64} {
  func.func @_pnorm_kernel(%arg0: i32, %arg1: memref<8x32xf32, #tpu.memory_space<vmem>>, %arg2: memref<1x1x1xf32, #tpu.memory_space<vmem>>) attributes {dimension_semantics = [#tpu.dimension_semantics<parallel>], iteration_bounds = array<i64: 1>, scalar_prefetch = 0 : i64, scratch_operands = 0 : i64, tpu.core_type = #tpu.core_type<tc>, window_params = [{transform_indices = @transform_0, window_bounds = array<i64: 8, 32>}, {transform_indices = @transform_1, window_bounds = array<i64: 1, 1, 1>}]} {
    %c0 = arith.constant 0 : index
    %c0_0 = arith.constant 0 : index
    %0 = vector.load %arg1[%c0, %c0_0] : memref<8x32xf32, #tpu.memory_space<vmem>>, vector<8x32xf32>
    %cst = arith.constant dense<0xFF800000> : vector<8xf32>
    %1 = vector.multi_reduction <maximumf>, %0, %cst [1] : vector<8x32xf32> to vector<8xf32>
    %2 = vector.shape_cast %1 : vector<8xf32> to vector<8x1xf32>
    %3 = vector.broadcast %2 : vector<8x1xf32> to vector<8x32xf32>
    %4 = arith.subf %0, %3 : vector<8x32xf32>
    %5 = math.exp %4 : vector<8x32xf32>
    %cst_1 = arith.constant dense<0.000000e+00> : vector<8xf32>
    %6 = vector.multi_reduction <add>, %5, %cst_1 [1] : vector<8x32xf32> to vector<8xf32>
    %7 = vector.shape_cast %6 : vector<8xf32> to vector<8x1xf32>
    %8 = math.sqrt %5 : vector<8x32xf32>
    %cst_2 = arith.constant -5.000000e-01 : f32
    %9 = vector.broadcast %cst_2 : f32 to vector<8x1xf32>
    %10 = math.powf %7, %9 : vector<8x1xf32>
    %11 = vector.broadcast %10 : vector<8x1xf32> to vector<8x32xf32>
    %12 = arith.mulf %8, %11 : vector<8x32xf32>
    %cst_3 = arith.constant 1.000000e-07 : f32
    %13 = vector.broadcast %cst_3 : f32 to vector<8x1xf32>
    %14 = arith.mulf %13, %7 : vector<8x1xf32>
    %15 = vector.broadcast %14 : vector<8x1xf32> to vector<8x32xf32>
    %16 = arith.cmpf olt, %5, %15 : vector<8x32xf32>
    %cst_4 = arith.constant 3.16227757E-4 : f32
    %17 = vector.broadcast %cst_4 : f32 to vector<8x32xf32>
    %18 = arith.select %16, %17, %12 : vector<8x32xi1>, vector<8x32xf32>
    %cst_5 = arith.constant dense<0.000000e+00> : vector<8xf32>
    %19 = vector.multi_reduction <add>, %18, %cst_5 [1] : vector<8x32xf32> to vector<8xf32>
    %20 = vector.shape_cast %19 : vector<8xf32> to vector<8x1xf32>
    %cst_6 = arith.constant dense<0.000000e+00> : vector<1xf32>
    %21 = vector.multi_reduction <add>, %20, %cst_6 [0] : vector<8x1xf32> to vector<1xf32>
    %22 = vector.shape_cast %21 : vector<1xf32> to vector<1x1xf32>
    %23 = vector.shape_cast %22 : vector<1x1xf32> to vector<1x1x1xf32>
    %c0_7 = arith.constant 0 : index
    %c0_8 = arith.constant 0 : index
    %c0_9 = arith.constant 0 : index
    %24 = vector.load %arg2[%c0_7, %c0_8, %c0_9] : memref<1x1x1xf32, #tpu.memory_space<vmem>>, vector<1x1x1xf32>
    tpu.vector_store %arg2[%c0_7, %c0_8, %c0_9], %23 {strides = array<i32>} : memref<1x1x1xf32, #tpu.memory_space<vmem>>, vector<1x1x1xf32>,
    return
  }
  func.func @transform_0(%arg0: i32) -> (i32, i32) {
    %c0_i32 = arith.constant 0 : i32
    %c0_i32_0 = arith.constant 0 : i32
    return %arg0, %c0_i32 : i32, i32
  }
  func.func @transform_1(%arg0: i32) -> (i32, i32, i32) {
    %c0_i32 = arith.constant 0 : i32
    %c0_i32_0 = arith.constant 0 : i32
    %c0_i32_1 = arith.constant 0 : i32
    return %arg0, %c0_i32, %c0_i32_0 : i32, i32, i32
  }
}

</mosaic_0001>

<llo_original>
// kernel: tpu_custom_call.1
$region0: #{tpu_custom_call.1}
  #allocation0 [shape = 'u32[]', space=smem, size = 0x4, offset = 0x4, fixed_abs, tag = 'smem constant byte address 0x4 - core index']
  #allocation1 [shape = 'u32[144,128]{1,0:T(1,128)}', space=vmem, size = 0x12000, scoped, tag = 'internal scratch']
  %s0 = inlined_call_operand.hbm [shape: f32[8,32], index: 0, kind: input, shape index: {}]
  %s1 = inlined_call_operand.hbm [shape: f32[1,1,1], index: 1, kind: output, shape index: {}]
  %s2 = sld [smem:[#allocation0]]
  $region18: #{tpu_custom_call.1} parent=0
    _
  %s4 = ssub.s32 1, %s2
  %s5 = scalar_select 0, %s4, %s2
  $region1: #{tpu_custom_call.1} parent=0
    #allocation2 [shape = 'u8[4096]{0}', space=vmem, size = 0x1000, scoped, tag = 'input window, operand 0, single buffered']
    #allocation3 [shape = 's32[1]{0}', space=sflag, size = 0x4, scoped, tag = 'scoped memory for tpu_custom_call.1']
    #allocation4 [shape = 's32[1]{0}', space=sflag, size = 0x4, scoped, tag = 'scoped memory for tpu_custom_call.1']
    #allocation5 [shape = 'u8[512]{0}', space=vmem, size = 0x400, scoped, tag = 'output window, operand 0, single buffered']
    %6 = vsyncpa [#allocation3], 0
    %7 = vsyncpa [#allocation4], 0
    // Predicated region
    $region2: #{tpu_custom_call.1} parent=1 // pred_check
      _
    $region3: #{tpu_custom_call.1} parent=1 // pred_check_branch
      %9 = sbr.rel (0) target = $region5
    $region4: #{tpu_custom_call.1} parent=1 // pred_region
      %s11 = ssub.s32 128, 128
      %12 = vsyncadd [#allocation3], %s11
      %s14 = sshll.u32 [#allocation2], 4
      %s15 = int_to_ptr.vmem [resolvable:$true] %s14
      %17 = dma.hbm_to_vmem [thread:$0]  %s0, 128, %s15, [#allocation3]
    $region5: #{tpu_custom_call.1} parent=1 // pred_fallthru
      _
    // Predicated region
    $region6: #{tpu_custom_call.1} parent=1 // pred_check
      _
    $region7: #{tpu_custom_call.1} parent=1 // pred_check_branch
      %19 = sbr.rel (0) target = $region9
    $region8: #{tpu_custom_call.1} parent=1 // pred_region
      %20 = dma.done [#allocation3], 128
    $region9: #{tpu_custom_call.1} parent=1 // pred_fallthru
      _
    %v21 = vld [vmem:[#allocation2] sm:$0xff]
    %vm22 = vcmask 261120
    %v23 = vsel %vm22, %v21, -inf
    %24 = vmax.xlane.f32.xlu0 %v23
    %v25 = vpop.xlane.xlu0 %24
    %v26 = vsub.f32 %v21, %v25
    %v27 = vmul.f32 %v26, 1.442695
    %v28 = vpow.pop %v27
    %v29 = vsel %vm22, %v28, 0.0
    %30 = vadd.xlane.f32.xlu0 %v29
    %v31 = vpop.xlane.xlu0 %30
    %v32 = vrsqrt.pop %v28
    %v33 = vmul.f32 %v28, %v32
    %vm34 = vcmp.eq.f32.partialorder %v28, inf
    %v35 = vsel %vm34, %v28, %v33
    %vm36 = vcmp.eq.f32.partialorder %v28, 0.0
    %v37 = vand.u32 %v28, 2147483648
    %v38 = vsel %vm36, %v37, %v35
    %v39 = vpow.f32 %v31, -0.5
    %v40 = vmul.f32 %v38, %v39
    %v41 = vmul.f32 %v31, 1e-07
    %vm42 = vcmp.lt.f32.partialorder %v28, %v41
    %v43 = vsel %vm42, 0.00031622776, %v40
    %v44 = vsel %vm22, %v43, 0.0
    %45 = vadd.xlane.f32.xlu0 %v44
    %v46 = vpop.xlane.xlu0 %45
    %v47 = vrot.slane %v46, 4
    %v48 = vadd.f32 %v46, %v47
    %v49 = vrot.slane %v48, 2
    %v50 = vadd.f32 %v48, %v49
    %v51 = vrot.slane %v50, 1
    %v52 = vadd.f32 %v50, %v51
    %vm53 = vcmask 0
    %54 = vst.msk [vmem:[#allocation5] sm:$0x1] %vm53, %v52
    // Predicated region
    $region10: #{tpu_custom_call.1} parent=1 // pred_check
      _
    $region11: #{tpu_custom_call.1} parent=1 // pred_check_branch
      %56 = sbr.rel (0) target = $region13
    $region12: #{tpu_custom_call.1} parent=1 // pred_region
      %s58 = ssub.s32 16, 16
      %59 = vsyncadd [#allocation4], %s58
      %s61 = sshll.u32 [#allocation5], 4
      %s62 = int_to_ptr.vmem [resolvable:$true] %s61
      %64 = dma.vmem_to_hbm [thread:$0]  %s62, 16, %s1, [#allocation4]
    $region13: #{tpu_custom_call.1} parent=1 // pred_fallthru
      _
    // Predicated region
    $region14: #{tpu_custom_call.1} parent=1 // pred_check
      _
    $region15: #{tpu_custom_call.1} parent=1 // pred_check_branch
      %66 = sbr.rel (0) target = $region17
    $region16: #{tpu_custom_call.1} parent=1 // pred_region
      %67 = dma.done [#allocation4], 16
    $region17: #{tpu_custom_call.1} parent=1 // pred_fallthru
      _
    %68 = vsyncpa [#allocation3], 1
    %69 = vsyncpa [#allocation4], 1

</llo_original>
